<compile_context>
chip_gen: v7x
topology: tpu7x:2x2x1
jax: 0.10.0
libtpu: 0.0.40
codegen_flags: <defaults>
</compile_context>

<pallas_src>
import jax
import jax.numpy as jnp
from jax import lax
from jax.experimental import pallas as pl
from jax.experimental.pallas import tpu as pltpu


def _round_up(x, m):
    return ((x + m - 1) // m) * m


def _vmem_budget_bytes():
    """Usable per-kernel VMEM budget for the current TPU generation.

    v5e/v6e: 128 MiB physical per TensorCore; v7x: 64 MiB.  Take ~70% of
    physical (headroom for Mosaic-internal scratch / semaphores) and never
    exceed 100 MiB.
    """
    try:
        cap = int(getattr(pltpu.get_tpu_info(), "vmem_capacity_bytes"))
    except Exception:  # interpret mode / unexpected backend
        cap = 64 * 1024 * 1024
    return min(int(cap * 0.70), 100 * 1024 * 1024)


def _linear_kernel(x_ref, w_ref, b_ref, o_ref):
    # x_ref: (tm, D)   w_ref: (A_pad, D)   b_ref: (1, A_pad)   o_ref: (tm, A_pad)
    acc = lax.dot_general(
        x_ref[...], w_ref[...],
        dimension_numbers=(((1,), (1,)), ((), ())),   # contract on D (RHS transposed)
        preferred_element_type=jnp.float32,           # f32 accumulation on the MXU
    )
    o_ref[...] = (acc + b_ref[...]).astype(o_ref.dtype)


def _linear_pallas(x2d, weight, bias, out_dtype):
    """y = x2d @ weight.T + bias, row-tiled + double-buffered, lane-dense out."""
    M, D = x2d.shape
    A = weight.shape[0]
    in_size = jnp.dtype(x2d.dtype).itemsize
    out_size = jnp.dtype(out_dtype).itemsize

    # ---- Lane-dense output: pad the output/weight lane axis to a multiple of
    # 128 when D is large enough that the extra traffic is negligible.
    # Unmasked vst vs. vst.msk is the biggest measured store-slot lever
    # (v5e has a single store slot).
    A_pad = A
    if A % 128 != 0 and D >= 512:
        A_pad = _round_up(A, 128)
        weight = jnp.pad(weight, ((0, A_pad - A), (0, 0)))
        bias = jnp.pad(bias, ((0, A_pad - A),))
    b2d = bias.reshape(1, A_pad).astype(jnp.float32)

    # ---- Derive the row-tile size from the VMEM budget.
    # Pallas double-buffers every input, so weight/bias count 2x as well.
    budget = _vmem_budget_bytes()
    headroom = 2 << 20
    fixed = 2 * (A_pad * D * in_size + A_pad * 4)          # resident weight + bias
    per_row = 2 * (D * in_size + A_pad * out_size)         # x tile + out tile (2x buffered)
    avail = budget - fixed - headroom
    # TODO(synk): if `fixed` alone exceeds the budget (very large act_dim*input_dim),
    # tile the D (reduction) axis as well instead of keeping the whole weight resident.
    tm = max(8, (avail // per_row) // 8 * 8) if avail > per_row * 8 else 8
    tm = int(min(tm, 2048))                  # diminishing returns past ~2048 rows/step
    tm = min(tm, _round_up(M, 8))            # never larger than the whole problem
    # Keep >= 2 grid steps when M allows so ("parallel",) can shard row tiles
    # across v7x's two TensorCores.
    if M > 8 and pl.cdiv(M, tm) < 2:
        tm = max(8, _round_up(pl.cdiv(M, 2), 8))
    grid = (pl.cdiv(M, tm),)                 # partial last tile handled by Pallas

    vmem_bytes = int(fixed + tm * per_row + headroom)

    cost = pl.CostEstimate(
        flops=2 * M * D * A_pad,
        transcendentals=0,
        bytes_accessed=int(M * D * in_size + A_pad * D * in_size
                           + A_pad * 4 + M * A_pad * out_size),
    )

    out = pl.pallas_call(
        _linear_kernel,
        out_shape=jax.ShapeDtypeStruct((M, A_pad), out_dtype),
        grid_spec=pltpu.PrefetchScalarGridSpec(
            num_scalar_prefetch=0,
            grid=grid,
            in_specs=[
                pl.BlockSpec((tm, D), lambda i: (i, 0)),      # streamed row tiles
                pl.BlockSpec((A_pad, D), lambda i: (0, 0)),   # VMEM-resident weight
                pl.BlockSpec((1, A_pad), lambda i: (0, 0)),   # VMEM-resident bias
            ],
            out_specs=pl.BlockSpec((tm, A_pad), lambda i: (i, 0)),
        ),
        compiler_params=pltpu.CompilerParams(
            dimension_semantics=("parallel",),   # independent row tiles (megacore)
            vmem_limit_bytes=vmem_bytes,
        ),
        cost_estimate=cost,
    )(x2d, weight, b2d)

    return out[:, :A] if A_pad != A else out


def agent_v_function_forward(x, weight, bias, no_sequence=False, *,
                             keep_input_dtype=False,
                             min_elements_for_pallas=1 << 20):
    """Pallas implementation of AgentVFunction.forward.

    x:      (seq, batch, input_dim)
    weight: (act_dim, input_dim)   (native nn.Linear layout — not transposed)
    bias:   (act_dim,)

    keep_input_dtype=True skips the module's .to(float32) input cast so bf16
    activations stream at half the HBM bytes (MXU still accumulates in f32);
    default False matches the PyTorch module.
    min_elements_for_pallas: below this x-element count the problem is pure
    launch overhead for a custom kernel, so dispatch to a plain XLA einsum.
    """
    x = jnp.asarray(x)
    if not keep_input_dtype:
        x = x.astype(jnp.float32)          # match the module's .to(torch.float32)
    weight = jnp.asarray(weight, x.dtype)
    bias = jnp.asarray(bias, jnp.float32)
    out_dtype = x.dtype
    A = weight.shape[0]

    if no_sequence:
        # Linear acts row-wise: slicing x[0] first == slicing v_value[0] after,
        # but skips compute / HBM traffic for the discarded (S-1)/S timesteps.
        x2d = x[0]
    else:
        S, B, D = x.shape
        x2d = x.reshape(S * B, D)

    M, D = x2d.shape
    if M * D < min_elements_for_pallas:
        # Tiny problem: XLA fusion beats kernel launch + per-step grid overhead.
        out2d = (jnp.einsum("md,ad->ma", x2d.astype(jnp.float32),
                            weight.astype(jnp.float32)) + bias[None, :]
                 ).astype(out_dtype)
    else:
        out2d = _linear_pallas(x2d, weight, bias, out_dtype)

    return out2d if no_sequence else out2d.reshape(S, B, A)


def _orthogonal_init(key, act_dim, input_dim, gain=0.01):
    """Gain-scaled orthogonal init producing a (act_dim, input_dim) weight
    (mirrors init_(nn.Linear) with nn.init.orthogonal_, zero bias)."""
    n, m = max(act_dim, input_dim), min(act_dim, input_dim)
    a = jax.random.normal(key, (n, m), dtype=jnp.float32)
    q, r = jnp.linalg.qr(a)
    q = q * jnp.sign(jnp.diagonal(r))[None, :]
    w = q if act_dim >= input_dim else q.T
    return gain * w


if __name__ == "__main__":
    key = jax.random.PRNGKey(0)
    kx, kw, kx2, kw2 = jax.random.split(key, 4)

    # ---- Config 1: module-scale demo shapes -------------------------------
    seq, batch, input_dim, act_dim = 8, 2, 32, 16
    x = jax.random.normal(kx, (seq, batch, input_dim), dtype=jnp.float32)
    weight = _orthogonal_init(kw, act_dim, input_dim, gain=0.01)
    bias = jnp.zeros((act_dim,), dtype=jnp.float32)
    ref = jnp.einsum("sbd,ad->sba", x, weight) + bias[None, None, :]

    # Force the Pallas path (min_elements_for_pallas=0) so the kernel actually
    # runs at these demo shapes; production callers keep the default fallback.
    v_full = jax.block_until_ready(
        agent_v_function_forward(x, weight, bias, no_sequence=False,
                                 min_elements_for_pallas=0))
    v_nos = jax.block_until_ready(
        agent_v_function_forward(x, weight, bias, no_sequence=True,
                                 min_elements_for_pallas=0))
    assert v_full.shape == (seq, batch, act_dim)
    assert v_nos.shape == (batch, act_dim)
    assert jnp.allclose(v_full, ref, atol=1e-5, rtol=1e-5)
    assert jnp.allclose(v_nos, ref[0, :, :], atol=1e-5, rtol=1e-5)

    # Small-problem fallback path (default threshold -> plain einsum).
    v_fb = jax.block_until_ready(agent_v_function_forward(x, weight, bias))
    assert jnp.allclose(v_fb, ref, atol=1e-5, rtol=1e-5)

    # ---- Config 2: exercises the partial last row-tile (M = 15, not % 8)
    # and the lane-dense output padding branch (act_dim = 16 < 128, D = 512).
    seq2, batch2, d2, a2 = 5, 3, 512, 16
    x2 = jax.random.normal(kx2, (seq2, batch2, d2), dtype=jnp.float32)
    w2 = 0.01 * jax.random.normal(kw2, (a2, d2), dtype=jnp.float32)
    b2 = jax.random.normal(jax.random.PRNGKey(1), (a2,), dtype=jnp.float32)
    ref2 = jnp.einsum("sbd,ad->sba", x2, w2) + b2[None, None, :]
    v2 = jax.block_until_ready(
        agent_v_function_forward(x2, w2, b2, no_sequence=False,
                                 min_elements_for_pallas=0))
    assert v2.shape == (seq2, batch2, a2)
    assert jnp.allclose(v2, ref2, atol=1e-4, rtol=1e-4)

    # ---- bf16 streaming path (keep_input_dtype=True): half the HBM bytes,
    # f32 accumulation.  Deviates from the module's .to(float32) on purpose.
    xb = x2.astype(jnp.bfloat16)
    wb = w2.astype(jnp.bfloat16)
    refb = jnp.einsum("sbd,ad->sba", xb.astype(jnp.float32),
                      wb.astype(jnp.float32)) + b2[None, None, :]
    vb = jax.block_until_ready(
        agent_v_function_forward(xb, wb, b2, no_sequence=False,
                                 keep_input_dtype=True,
                                 min_elements_for_pallas=0))
    assert vb.dtype == jnp.bfloat16
    assert jnp.allclose(vb.astype(jnp.float32), refb, atol=5e-2, rtol=5e-2)

    print("KERNEL_OK")
</pallas_src>

<mosaic_0001>
module attributes {stable_mosaic.version = 11 : i64} {
  func.func @_linear_kernel(%arg0: i32, %arg1: memref<8x32xf32, #tpu.memory_space<vmem>>, %arg2: memref<16x32xf32, #tpu.memory_space<vmem>>, %arg3: memref<1x16xf32, #tpu.memory_space<vmem>>, %arg4: memref<8x16xf32, #tpu.memory_space<vmem>>) attributes {dimension_semantics = [#tpu.dimension_semantics<parallel>], iteration_bounds = array<i64: 2>, scalar_prefetch = 0 : i64, scratch_operands = 0 : i64, tpu.core_type = #tpu.core_type<tc>, window_params = [{transform_indices = @transform_0, window_bounds = array<i64: 8, 32>}, {pipeline_mode = #tpu.pipeline_mode<synchronous>, transform_indices = @transform_1, window_bounds = array<i64: 16, 32>}, {pipeline_mode = #tpu.pipeline_mode<synchronous>, transform_indices = @transform_2, window_bounds = array<i64: 1, 16>}, {transform_indices = @transform_3, window_bounds = array<i64: 8, 16>}]} {
    %c0 = arith.constant 0 : index
    %c0_0 = arith.constant 0 : index
    %0 = vector.load %arg1[%c0, %c0_0] : memref<8x32xf32, #tpu.memory_space<vmem>>, vector<8x32xf32>
    %c0_1 = arith.constant 0 : index
    %c0_2 = arith.constant 0 : index
    %1 = vector.load %arg2[%c0_1, %c0_2] : memref<16x32xf32, #tpu.memory_space<vmem>>, vector<16x32xf32>
    %cst = arith.constant dense<0.000000e+00> : vector<8x16xf32>
    %2 = tpu.matmul %0, %1, %cst {dimension_numbers = #tpu.dot_dimension_numbers<[1], [1], [0], [0], [0, 0, 1, 0], [], []>} : vector<8x32xf32>, vector<16x32xf32>, vector<8x16xf32> -> vector<8x16xf32>
    %c0_3 = arith.constant 0 : index
    %c0_4 = arith.constant 0 : index
    %3 = vector.load %arg3[%c0_3, %c0_4] : memref<1x16xf32, #tpu.memory_space<vmem>>, vector<1x16xf32>
    %4 = vector.broadcast %3 : vector<1x16xf32> to vector<8x16xf32>
    %5 = arith.addf %2, %4 : vector<8x16xf32>
    %c0_5 = arith.constant 0 : index
    %c0_6 = arith.constant 0 : index
    %6 = vector.load %arg4[%c0_5, %c0_6] : memref<8x16xf32, #tpu.memory_space<vmem>>, vector<8x16xf32>
    tpu.vector_store %arg4[%c0_5, %c0_6], %5 {strides = array<i32>} : memref<8x16xf32, #tpu.memory_space<vmem>>, vector<8x16xf32>,
    return
  }
  func.func @transform_0(%arg0: i32) -> (i32, i32) {
    %c0_i32 = arith.constant 0 : i32
    %c0_i32_0 = arith.constant 0 : i32
    return %arg0, %c0_i32 : i32, i32
  }
  func.func @transform_1(%arg0: i32) -> (i32, i32) {
    %c0_i32 = arith.constant 0 : i32
    %c0_i32_0 = arith.constant 0 : i32
    %c0_i32_1 = arith.constant 0 : i32
    return %c0_i32, %c0_i32_0 : i32, i32
  }
  func.func @transform_2(%arg0: i32) -> (i32, i32) {
    %c0_i32 = arith.constant 0 : i32
    %c0_i32_0 = arith.constant 0 : i32
    %c0_i32_1 = arith.constant 0 : i32
    return %c0_i32, %c0_i32_0 : i32, i32
  }
  func.func @transform_3(%arg0: i32) -> (i32, i32) {
    %c0_i32 = arith.constant 0 : i32
    %c0_i32_0 = arith.constant 0 : i32
    return %arg0, %c0_i32 : i32, i32
  }
}

</mosaic_0001>

<llo_original>
// kernel: tpu_custom_call.1
$region0: #{tpu_custom_call.1}
  #allocation0 [shape = 'u32[]', space=smem, size = 0x4, offset = 0x4, fixed_abs, tag = 'smem constant byte address 0x4 - core index']
  #allocation1 [shape = 'u32[144,128]{1,0:T(1,128)}', space=vmem, size = 0x12000, scoped, tag = 'internal scratch']
  %s0 = inlined_call_operand.hbm [shape: f32[16,32], index: 0, kind: input, shape index: {}]
  %s1 = inlined_call_operand.hbm [shape: f32[16,32], index: 1, kind: input, shape index: {}]
  %s2 = inlined_call_operand.vmem [shape: f32[1,16], index: 2, kind: input, shape index: {}]
  %s3 = inlined_call_operand.hbm [shape: f32[16,16], index: 3, kind: output, shape index: {}]
  %s4 = sld [smem:[#allocation0]]
  $region53: #{tpu_custom_call.1} parent=0
    _
  %s6 = ssub.s32 1, %s4
  %s7 = scalar_select 0, %s6, %s4
  $region1: #{tpu_custom_call.1} parent=0
    #allocation2 [shape = 'u8[8192]{0}', space=vmem, size = 0x2000, scoped, tag = 'input window, operand 0']
    #allocation3 [shape = 's32[2]{0}', space=sflag, size = 0x8, scoped, tag = 'scoped memory for tpu_custom_call.1']
    #allocation4 [shape = 's32[2]{0}', space=sflag, size = 0x8, scoped, tag = 'scoped memory for tpu_custom_call.1']
    #allocation5 [shape = 'u8[8192]{0}', space=vmem, size = 0x2000, scoped, tag = 'input window, operand 1, single buffered']
    #allocation6 [shape = 's32[1]{0}', space=sflag, size = 0x4, scoped, tag = 'scoped memory for tpu_custom_call.1']
    #allocation7 [shape = 'u8[8192]{0}', space=vmem, size = 0x2000, scoped, tag = 'output window, operand 0']
    %8 = vsyncpa [#allocation3], 0
    %s9 = scalar_lea.sflag [#allocation3], 1
    %10 = vsyncpa %s9, 0
    %11 = vsyncpa [#allocation6], 0
    %12 = vsyncpa [#allocation4], 0
    %s13 = scalar_lea.sflag [#allocation4], 1
    %14 = vsyncpa %s13, 0
    loop: start=0, step=1, limit=4
    $region2: #{tpu_custom_call.1} parent=1 // loop_pre_header
      _
    $region3: #{tpu_custom_call.1} parent=1 // loop_header
      %s16 = sphi 0, %s20
      %p17 = scmp.ge.s32.totalorder %s16, 4
      %s26 = sphi 0, %s28
      %s29 = sphi 0, %s26
      %s30 = sphi 0, %s29
      %s46 = sphi 0, %s30
      %s50 = sphi 0, %s50
      %s52 = sphi 0, %s50
      %s53 = sphi 0, %s52
      %s67 = sphi 0, %s53
      %s71 = sphi 0, %s71
      %s73 = sphi 0, %s71
      %s74 = sphi 0, %s73
      %s88 = sphi 0, %s74
      %s94 = sphi 0, %s96
      %s97 = sphi 0, %s94
      %s98 = sphi 0, %s97
      %s114 = sphi 0, %s98
    $region4: #{tpu_custom_call.1} parent=1 // loop_header_branch
      %19 = sbr.rel (%p17) target = $region8
    $region5: #{tpu_custom_call.1} parent=1 // loop_body
      %s21 = ssub.s32 %s16, 1
      %s22 = ssub.s32 %s16, 2
      %s23 = sadd.s32 %s16, 1
      %s24 = ssub.s32 %s16, %s23
      %p25 = scmp.eq.s32.totalorder %s24, 0
      %s27 = sadd.s32 %s26, 1
      %s28 = scalar_select %p25, %s26, %s27
      %p31 = pneg %p25
      %p32 = scmp.eq.s32.totalorder %s16, 1
      %p33 = por %p31, %p32
      %p34 = scmp.ne.s32.totalorder %s26, %s29
      %p35 = scmp.eq.s32.totalorder %s16, 0
      %p36 = por %p34, %p35
      %p37 = scmp.ne.s32.totalorder %s26, %s29
      %p38 = scmp.eq.s32.totalorder %s21, 1
      %p39 = por %p37, %p38
      %p40 = scmp.ne.s32.totalorder %s29, %s30
      %p41 = scmp.eq.s32.totalorder %s21, 0
      %p42 = por %p40, %p41
      %p43 = scmp.ne.s32.totalorder %s29, %s30
      %p44 = scmp.eq.s32.totalorder %s22, 1
      %p45 = por %p43, %p44
      %p47 = scmp.ne.s32.totalorder %s30, %s46
      %p48 = scmp.eq.s32.totalorder %s22, 0
      %p49 = por %p47, %p48
      %s51 = sadd.s32 %s50, 1
      %p54 = scmp.eq.s32.totalorder %s16, 1
      %p55 = scmp.ne.s32.totalorder %s50, %s52
      %p56 = scmp.eq.s32.totalorder %s16, 0
      %p57 = por %p55, %p56
      %p58 = scmp.ne.s32.totalorder %s50, %s52
      %p59 = scmp.eq.s32.totalorder %s21, 1
      %p60 = por %p58, %p59
      %p61 = scmp.ne.s32.totalorder %s52, %s53
      %p62 = scmp.eq.s32.totalorder %s21, 0
      %p63 = por %p61, %p62
      %p64 = scmp.ne.s32.totalorder %s52, %s53
      %p65 = scmp.eq.s32.totalorder %s22, 1
      %p66 = por %p64, %p65
      %p68 = scmp.ne.s32.totalorder %s53, %s67
      %p69 = scmp.eq.s32.totalorder %s22, 0
      %p70 = por %p68, %p69
      %s72 = sadd.s32 %s71, 1
      %p75 = scmp.eq.s32.totalorder %s16, 1
      %p76 = scmp.ne.s32.totalorder %s71, %s73
      %p77 = scmp.eq.s32.totalorder %s16, 0
      %p78 = por %p76, %p77
      %p79 = scmp.ne.s32.totalorder %s71, %s73
      %p80 = scmp.eq.s32.totalorder %s21, 1
      %p81 = por %p79, %p80
      %p82 = scmp.ne.s32.totalorder %s73, %s74
      %p83 = scmp.eq.s32.totalorder %s21, 0
      %p84 = por %p82, %p83
      %p85 = scmp.ne.s32.totalorder %s73, %s74
      %p86 = scmp.eq.s32.totalorder %s22, 1
      %p87 = por %p85, %p86
      %p89 = scmp.ne.s32.totalorder %s74, %s88
      %p90 = scmp.eq.s32.totalorder %s22, 0
      %p91 = por %p89, %p90
      %s92 = ssub.s32 %s16, %s23
      %p93 = scmp.eq.s32.totalorder %s92, 0
      %s95 = sadd.s32 %s94, 1
      %s96 = scalar_select %p93, %s94, %s95
      %p99 = pneg %p93
      %p100 = scmp.eq.s32.totalorder %s16, 1
      %p101 = por %p99, %p100
      %p102 = scmp.ne.s32.totalorder %s94, %s97
      %p103 = scmp.eq.s32.totalorder %s16, 0
      %p104 = por %p102, %p103
      %p105 = scmp.ne.s32.totalorder %s94, %s97
      %p106 = scmp.eq.s32.totalorder %s21, 1
      %p107 = por %p105, %p106
      %p108 = scmp.ne.s32.totalorder %s97, %s98
      %p109 = scmp.eq.s32.totalorder %s21, 0
      %p110 = por %p108, %p109
      %p111 = scmp.ne.s32.totalorder %s97, %s98
      %p112 = scmp.eq.s32.totalorder %s22, 1
      %p113 = por %p111, %p112
      %p115 = scmp.ne.s32.totalorder %s98, %s114
      %p116 = scmp.eq.s32.totalorder %s22, 0
      %p117 = por %p115, %p116
      %p118 = scmp.le.s32.totalorder 1, %s16
      %p119 = scmp.lt.s32.totalorder %s16, 3
      %p120 = pnand %p118, %p119
      %p121 = pneg %p120
      // Predicated region
      $region9: #{tpu_custom_call.1} parent=5 // pred_check
        _
      $region10: #{tpu_custom_call.1} parent=5 // pred_check_branch
        %123 = sbr.rel (%p120) target = $region12
      $region11: #{tpu_custom_call.1} parent=5 // pred_region
        %s124 = ssub.s32 %s16, 1
        // Predicated region
        $region13: #{tpu_custom_call.1} parent=11 // pred_check
          %p125 = pneg %p63
        $region14: #{tpu_custom_call.1} parent=11 // pred_check_branch
          %127 = sbr.rel (%p125) target = $region16
        $region15: #{tpu_custom_call.1} parent=11 // pred_region
          %s129 = ssub.s32 256, 256
          %130 = vsyncadd [#allocation6], %s129
          %s131 = sshll.u32 [#allocation5], 4
          %s132 = int_to_ptr.vmem [resolvable:$true] %s131
          %137 = dma.hbm_to_vmem [thread:$0]  %s1, 256, %s132, [#allocation6], 128, 128, 8
        $region16: #{tpu_custom_call.1} parent=11 // pred_fallthru
          _
        // Predicated region
        $region17: #{tpu_custom_call.1} parent=11 // pred_check
          %p138 = pneg %p84
        $region18: #{tpu_custom_call.1} parent=11 // pred_check_branch
          %140 = sbr.rel (%p138) target = $region20
        $region19: #{tpu_custom_call.1} parent=11 // pred_region
          _
        $region20: #{tpu_custom_call.1} parent=11 // pred_fallthru
          _
      $region12: #{tpu_custom_call.1} parent=5 // pred_fallthru
        _
      %p141 = scmp.lt.s32.totalorder %s16, 2
      // Predicated region
      $region21: #{tpu_custom_call.1} parent=5 // pred_check
        %p142 = pneg %p141
      $region22: #{tpu_custom_call.1} parent=5 // pred_check_branch
        %144 = sbr.rel (%p142) target = $region24
      $region23: #{tpu_custom_call.1} parent=5 // pred_region
        // Predicated region
        $region25: #{tpu_custom_call.1} parent=23 // pred_check
          %p145 = pneg %p36
        $region26: #{tpu_custom_call.1} parent=23 // pred_check_branch
          %147 = sbr.rel (%p145) target = $region28
        $region27: #{tpu_custom_call.1} parent=23 // pred_region
          %s148 = sand.u32 %s26, 1
          %s149 = scalar_lea.sflag [#allocation3], %s148
          %s150 = sand.u32 %s26, 1
          %s151 = smul.addr %s150, 8
          %s152 = scalar_lea.vmem [#allocation2], %s151
          %s154 = ssub.s32 128, 128
          %155 = vsyncadd %s149, %s154
          %s156 = smul.addr %s16, 128
          %s157 = scalar_lea.hbm %s0, %s156
          %s159 = sshll.u32 %s152, 4
          %s160 = int_to_ptr.vmem [resolvable:$true] %s159
          %162 = dma.hbm_to_vmem [thread:$0]  %s157, 128, %s160, %s149
        $region28: #{tpu_custom_call.1} parent=23 // pred_fallthru
          _
      $region24: #{tpu_custom_call.1} parent=5 // pred_fallthru
        _
      %p163 = scmp.le.s32.totalorder 1, %s16
      %p164 = scmp.lt.s32.totalorder %s16, 3
      %p165 = pnand %p163, %p164
      %p166 = pneg %p165
      // Predicated region
      $region29: #{tpu_custom_call.1} parent=5 // pred_check
        _
      $region30: #{tpu_custom_call.1} parent=5 // pred_check_branch
        %168 = sbr.rel (%p165) target = $region32
      $region31: #{tpu_custom_call.1} parent=5 // pred_region
        %s169 = ssub.s32 %s16, 1
        %s170 = sand.u32 %s29, 1
        %s171 = scalar_lea.sflag [#allocation3], %s170
        %s172 = sand.u32 %s29, 1
        %s173 = smul.addr %s172, 8
        %s174 = scalar_lea.vmem [#allocation2], %s173
        // Predicated region
        $region33: #{tpu_custom_call.1} parent=31 // pred_check
          %p175 = pneg %p42
        $region34: #{tpu_custom_call.1} parent=31 // pred_check_branch
          %177 = sbr.rel (%p175) target = $region36
        $region35: #{tpu_custom_call.1} parent=31 // pred_region
          %178 = dma.done %s171, 128
        $region36: #{tpu_custom_call.1} parent=31 // pred_fallthru
          _
        // Predicated region
        $region37: #{tpu_custom_call.1} parent=31 // pred_check
          %p179 = pneg %p63
        $region38: #{tpu_custom_call.1} parent=31 // pred_check_branch
          %181 = sbr.rel (%p179) target = $region40
        $region39: #{tpu_custom_call.1} parent=31 // pred_region
          %182 = dma.done [#allocation6], 256
        $region40: #{tpu_custom_call.1} parent=31 // pred_fallthru
          _
        %s183 = sand.u32 %s29, 1
        %s184 = scalar_lea.sflag [#allocation3], %s183
        %s185 = sand.u32 %s29, 1
        %s186 = smul.addr %s185, 8
        %s187 = scalar_lea.vmem [#allocation2], %s186
        %p188 = pneg %p42
        %p189 = pneg %p39
        %p190 = pneg %p63
        %p191 = pneg %p60
        %p192 = pneg %p84
        %p193 = pneg %p81
        %p194 = pneg %p110
        %p195 = pneg %p107
        %s196 = sand.u32 %s97, 1
        %s197 = scalar_lea.sflag [#allocation4], %s196
        %s198 = sand.u32 %s97, 1
        %s199 = smul.addr %s198, 8
        %s200 = scalar_lea.vmem [#allocation7], %s199
        %v201 = vld [vmem:[%s174] sm:$0xff]
        %v202 = vld [vmem:[#allocation5] sm:$0xff]
        %v203 = vld [vmem:[#allocation5 + $0x8] sm:$0xff]
        %v204 = vld [vmem:[%s2] sm:$0x1]
        %v206 = vlaneseq
        %v207 = vshrl.u32 %v206, 7
        %v208 = vsub.s32 0, %v207
        %v209 = vrot.slane %v204, %v208
        %vm211 = vcmask 261120
        %v213 = vsel %vm211, %v201, 0
        %v216 = vsel %vm211, %v202, 0
        %v219 = vsel %vm211, %v203, 0
        %221 = vmatprep.subr.mxu0 0.0
        %222 = vmatpush1.xpose.msra.mxu0 %v216
        %223 = vmatprep.subr.mxu0 0.0
        %224 = vmatpush1.xpose.msra.mxu0 %v219
        %225 = vmatprep.subr.mxu0 0.0
        %226 = vmatpush1.xpose.msra.mxu0 0.0
        %227 = vmatprep.subr.mxu0 0.0
        %228 = vmatpush1.xpose.msra.mxu0 0.0
        %229 = vmatprep.subr.mxu0 0.0
        %230 = vmatpush1.xpose.msra.mxu0 0.0
        %231 = vmatprep.subr.mxu0 0.0
        %232 = vmatpush1.xpose.msra.mxu0 0.0
        %233 = vmatprep.subr.mxu0 0.0
        %234 = vmatpush1.xpose.msra.mxu0 0.0
        %235 = vmatprep.subr.mxu0 0.0
        %236 = vmatpush1.xpose.msra.mxu0 0.0
        %237 = vmatprep.subr.mxu0 0.0
        %238 = vmatpush1.xpose.msra.mxu0 0.0
        %239 = vmatprep.subr.mxu0 0.0
        %240 = vmatpush1.xpose.msra.mxu0 0.0
        %241 = vmatprep.subr.mxu0 0.0
        %242 = vmatpush1.xpose.msra.mxu0 0.0
        %243 = vmatprep.subr.mxu0 0.0
        %244 = vmatpush1.xpose.msra.mxu0 0.0
        %245 = vmatprep.subr.mxu0 0.0
        %246 = vmatpush1.xpose.msra.mxu0 0.0
        %247 = vmatprep.subr.mxu0 0.0
        %248 = vmatpush1.xpose.msra.mxu0 0.0
        %249 = vmatprep.subr.mxu0 0.0
        %250 = vmatpush1.xpose.msra.mxu0 0.0
        %251 = vmatprep.subr.mxu0 0.0
        %252 = vmatpush1.xpose.msra.mxu0 0.0
        %253 = vmatprep.subr.mxu0 0.0
        %254 = vmatpush1.xpose.msra.mxu0 0.0
        %255 = vmatprep.subr.mxu0 0.0
        %256 = vmatpush1.xpose.msra.mxu0 0.0
        %257 = vmatprep.subr.mxu0 0.0
        %258 = vmatpush1.xpose.msra.mxu0 0.0
        %259 = vmatprep.subr.mxu0 0.0
        %260 = vmatpush1.xpose.msra.mxu0 0.0
        %261 = vmatprep.subr.mxu0 0.0
        %262 = vmatpush1.xpose.msra.mxu0 0.0
        %263 = vmatprep.subr.mxu0 0.0
        %264 = vmatpush1.xpose.msra.mxu0 0.0
        %265 = vmatprep.subr.mxu0 0.0
        %266 = vmatpush1.xpose.msra.mxu0 0.0
        %267 = vmatprep.subr.mxu0 0.0
        %268 = vmatpush1.xpose.msra.mxu0 0.0
        %269 = vmatprep.subr.mxu0 0.0
        %270 = vmatpush1.xpose.msra.mxu0 0.0
        %271 = vmatprep.subr.mxu0 0.0
        %272 = vmatpush1.xpose.msra.mxu0 0.0
        %273 = vmatprep.subr.mxu0 0.0
        %274 = vmatpush1.xpose.msra.mxu0 0.0
        %275 = vmatprep.subr.mxu0 0.0
        %276 = vmatpush1.xpose.msra.mxu0 0.0
        %277 = vmatprep.subr.mxu0 0.0
        %278 = vmatpush1.xpose.msra.mxu0 0.0
        %279 = vmatprep.subr.mxu0 0.0
        %280 = vmatpush1.xpose.msra.mxu0 0.0
        %281 = vmatprep.subr.mxu0 0.0
        %282 = vmatpush1.xpose.msra.mxu0 0.0
        %283 = vmatprep.subr.mxu0 0.0
        %284 = vmatpush1.xpose.msra.mxu0 0.0
        %285 = vmatprep.mubr.f32.mxu0 0.0
        %286 = vmatmul.mubr.f32.gmra.mrb[0].mxu0 %v213
        %v287 = vpop.f32.mrb[0].mxu0
        %v288 = vadd.f32 %v209, %v287
        %v289 = vpop.f32.mrb[0].mxu0
        %290 = vdwg.mxu0
        %vm291 = vcmask 130048
        %292 = vst.msk [vmem:[%s200] sm:$0xff] %vm291, %v288
        %s293 = sand.u32 %s97, 1
        %s294 = scalar_lea.sflag [#allocation4], %s293
        %s295 = sand.u32 %s97, 1
        %s296 = smul.addr %s295, 8
        %s297 = scalar_lea.vmem [#allocation7], %s296
        // Predicated region
        $region41: #{tpu_custom_call.1} parent=31 // pred_check
          %p298 = pneg %p107
        $region42: #{tpu_custom_call.1} parent=31 // pred_check_branch
          %300 = sbr.rel (%p298) target = $region44
        $region43: #{tpu_custom_call.1} parent=31 // pred_region
          %s302 = ssub.s32 128, 128
          %303 = vsyncadd %s294, %s302
          %s304 = smul.addr %s21, 128
          %s305 = scalar_lea.hbm %s3, %s304
          %s307 = sshll.u32 %s297, 4
          %s308 = int_to_ptr.vmem [resolvable:$true] %s307
          %310 = dma.vmem_to_hbm [thread:$0]  %s308, 128, %s305, %s294
        $region44: #{tpu_custom_call.1} parent=31 // pred_fallthru
          _
      $region32: #{tpu_custom_call.1} parent=5 // pred_fallthru
        _
      %p311 = scmp.le.s32.totalorder 2, %s16
      // Predicated region
      $region45: #{tpu_custom_call.1} parent=5 // pred_check
        %p312 = pneg %p311
      $region46: #{tpu_custom_call.1} parent=5 // pred_check_branch
        %314 = sbr.rel (%p312) target = $region48
      $region47: #{tpu_custom_call.1} parent=5 // pred_region
        %s315 = ssub.s32 %s16, 2
        // Predicated region
        $region49: #{tpu_custom_call.1} parent=47 // pred_check
          %p316 = pneg %p113
        $region50: #{tpu_custom_call.1} parent=47 // pred_check_branch
          %318 = sbr.rel (%p316) target = $region52
        $region51: #{tpu_custom_call.1} parent=47 // pred_region
          %s319 = sand.u32 %s98, 1
          %s320 = scalar_lea.sflag [#allocation4], %s319
          %s321 = sand.u32 %s98, 1
          %s322 = smul.addr %s321, 8
          %s323 = scalar_lea.vmem [#allocation7], %s322
          %324 = dma.done %s320, 128
        $region52: #{tpu_custom_call.1} parent=47 // pred_fallthru
          _
      $region48: #{tpu_custom_call.1} parent=5 // pred_fallthru
        _
    $region6: #{tpu_custom_call.1} parent=1 // loop_footer
      %s20 = sadd.s32 1, %s16
    $region7: #{tpu_custom_call.1} parent=1 // loop_footer_branch
      %15 = sbr.rel target = $region3
    $region8: #{tpu_custom_call.1} parent=1 // loop_exit
      _
    %325 = vsyncpa [#allocation3], 1
    %s326 = scalar_lea.sflag [#allocation3], 1
    %327 = vsyncpa %s326, 1
    %328 = vsyncpa [#allocation6], 1
    %329 = vsyncpa [#allocation4], 1
    %s330 = scalar_lea.sflag [#allocation4], 1
    %331 = vsyncpa %s330, 1

</llo_original>
